<compile_context>
chip_gen: v6e
topology: v6e:2x2x1
jax: 0.10.0
libtpu: 0.0.40
codegen_flags: <defaults>
</compile_context>

<pallas_src>
import functools
import math

import jax
import jax.numpy as jnp
from jax import lax
from jax.experimental import pallas as pl
from jax.experimental.pallas import tpu as pltpu


# -----------------------------------------------------------------------------
# Kernel A: RMSNorm (over channels) + 1x1 qkv projection.
# x tile: (C, TN)  (channels on sublanes, tokens on lanes -> lane dense)
# -----------------------------------------------------------------------------
def _qkv_kernel(x_ref, g_ref, w_ref, o_ref):
    x = x_ref[...]                                         # (C, TN) f32
    ss = jnp.sum(x * x, axis=0, keepdims=True)             # (1, TN)
    # F.normalize(dim=1): x / max(||x||, 1e-12); g already carries sqrt(C).
    inv = lax.rsqrt(jnp.maximum(ss, 1e-24))
    xn = (x * inv * g_ref[...]).astype(jnp.bfloat16)       # (C, TN)
    qkv = lax.dot_general(w_ref[...], xn,
                          (((0,), (0,)), ((), ())),
                          preferred_element_type=jnp.float32)   # (3*hidden, TN)
    o_ref[...] = qkv.astype(o_ref.dtype)


# -----------------------------------------------------------------------------
# Kernel B: flash attention (mem_kv seeds the online softmax) + to_out conv.
# q/k/v tiles: (heads, dh, T) — scores are computed transposed (TK, TQ) so all
# softmax reductions are sublane reductions and every broadcast is (1, TQ).
# -----------------------------------------------------------------------------
def _flash_kernel(q_ref, k_ref, v_ref, mk_ref, mv_ref, wo_ref, bo_ref, o_ref,
                  acc_sc, m_sc, l_sc, *, tk, n_valid, mask_kv):
    ki = pl.program_id(2)
    q = q_ref[...]                                  # (heads, dh, TQ) bf16 (pre-scaled)

    @pl.when(ki == 0)
    def _init():
        # memory KV block seeds the running max / sum / accumulator.
        sim_m = lax.dot_general(mk_ref[...], q, (((1,), (1,)), ((0,), (0,))),
                                preferred_element_type=jnp.float32)     # (h, M, TQ)
        m0 = jnp.max(sim_m, axis=1, keepdims=True)                       # (h, 1, TQ)
        p0 = jnp.exp(sim_m - m0)
        l0 = jnp.sum(p0, axis=1, keepdims=True)
        acc0 = lax.dot_general(mv_ref[...], p0.astype(mv_ref.dtype),
                               (((2,), (1,)), ((0,), (0,))),
                               preferred_element_type=jnp.float32)       # (h, dh, TQ)
        m_sc[...] = m0
        l_sc[...] = l0
        acc_sc[...] = acc0

    k = k_ref[...]                                  # (heads, dh, TK) bf16
    v = v_ref[...]                                  # (heads, dh, TK) bf16
    sim = lax.dot_general(k, q, (((1,), (1,)), ((0,), (0,))),
                          preferred_element_type=jnp.float32)            # (h, TK, TQ)
    if mask_kv:
        # Padded token columns in K must not contribute to the softmax.
        kv_idx = ki * tk + lax.broadcasted_iota(jnp.int32, sim.shape, 1)
        sim = jnp.where(kv_idx < n_valid, sim, -jnp.inf)
    m_prev = m_sc[...]
    m_new = jnp.maximum(m_prev, jnp.max(sim, axis=1, keepdims=True))
    alpha = jnp.exp(m_prev - m_new)
    p = jnp.exp(sim - m_new)                                             # (h, TK, TQ)
    l_sc[...] = alpha * l_sc[...] + jnp.sum(p, axis=1, keepdims=True)
    pv = lax.dot_general(v, p.astype(v.dtype), (((2,), (1,)), ((0,), (0,))),
                         preferred_element_type=jnp.float32)             # (h, dh, TQ)
    acc_sc[...] = alpha * acc_sc[...] + pv
    m_sc[...] = m_new

    @pl.when(ki == pl.num_programs(2) - 1)
    def _finalize():
        inv_l = pl.reciprocal(l_sc[...], approx=True)                    # (h, 1, TQ)
        out = (acc_sc[...] * inv_l).astype(jnp.bfloat16)                 # (h, dh, TQ)
        # Free sublane merge (dh is a multiple of 8): (h, dh, TQ) -> (hidden, TQ)
        out = out.reshape(out.shape[0] * out.shape[1], out.shape[2])
        # to_out 1x1 conv as ONE matmul with K=hidden (instead of heads-batched
        # K=dh matmuls + a cross-head VPU sum).
        y = lax.dot_general(wo_ref[...], out, (((0,), (0,)), ((), ())),
                            preferred_element_type=jnp.float32)          # (C, TQ)
        o_ref[...] = (y + bo_ref[...]).astype(o_ref.dtype)


# -----------------------------------------------------------------------------
# Tile / chip helpers
# -----------------------------------------------------------------------------
def _vmem_capacity_bytes():
    """Per-core VMEM capacity; conservative (v7x-sized) fallback if the query
    is unavailable so we never request more scoped VMEM than exists."""
    try:
        info = pltpu.get_tpu_info()
        cap = getattr(info, "vmem_capacity_bytes", None)
        if cap:
            return int(cap)
    except Exception:
        pass
    return 64 * 1024 * 1024


def _pick_block(n, pref):
    """Largest multiple of 128 that divides n and is <= pref; full axis as a
    last resort (always legal). Callers pad n to a multiple of 128 first so
    the 128-fallback never fires for large non-aligned N."""
    pref = min(pref, n)
    if n % 128 != 0:
        return n
    t = (pref // 128) * 128
    while t >= 128:
        if n % t == 0:
            return t
        t -= 128
    return n


# -----------------------------------------------------------------------------
# Wrapper
# -----------------------------------------------------------------------------
def attention_forward(x_nchw, params, *, heads, dim_head, num_mem_kv,
                      q_block=None, kv_block=None, n_block=None):
    assert num_mem_kv >= 1, "kernel requires at least one memory KV token"
    B, C, H, W = x_nchw.shape
    N = H * W
    hidden = heads * dim_head
    dh = dim_head
    scale = dim_head ** -0.5

    # ---- generation-aware tile / VMEM budget selection ----------------------
    vmem_cap = _vmem_capacity_bytes()
    small_vmem = vmem_cap < 100 * 1024 * 1024        # v7x: 64 MiB/TC
    if q_block is None:
        q_block = 512 if small_vmem else 1024        # bias TQ > TK: K/V re-read = N/TQ
    if kv_block is None:
        kv_block = 512
    if n_block is None:
        n_block = 8192 if small_vmem else 4096       # kernel A is pure HBM bandwidth
    vmem_b = (48 if small_vmem else 96) * 1024 * 1024
    vmem_a = (48 if small_vmem else 64) * 1024 * 1024

    # NCHW -> (B, C, N): pure reshape, tokens stay on the (lane-dense) last axis.
    x_bcn = x_nchw.reshape(B, C, N)

    # Pad the token axis once to a multiple of 128 (masked KV handles padding).
    if N % 128 == 0:
        n_pad = N
    else:
        n_pad = ((N + 127) // 128) * 128
        x_bcn = jnp.pad(x_bcn, ((0, 0), (0, 0), (0, n_pad - N)))
    needs_mask = n_pad != N

    # ---- one-time parameter folds / layout / bf16 casts ---------------------
    g = (params["g"].reshape(C, 1) * (float(C) ** 0.5)).astype(jnp.float32)
    w_qkv = params["w_qkv"].astype(jnp.float32)
    # fold the softmax scale into the q columns of the qkv projection weight
    w_qkv = w_qkv.at[:, :hidden].multiply(scale).astype(jnp.bfloat16)     # (C, 3*hidden)
    mem_k = jnp.transpose(params["mem_k"], (0, 2, 1)).astype(jnp.bfloat16)  # (h, dh, M)
    mem_v = jnp.transpose(params["mem_v"], (0, 2, 1)).astype(jnp.bfloat16)  # (h, dh, M)
    w_out = params["w_out"].astype(jnp.bfloat16)                            # (hidden, C)
    b_out = params["b_out"].reshape(C, 1).astype(jnp.float32)               # (C, 1)

    TN = _pick_block(n_pad, n_block)
    TQ = _pick_block(n_pad, q_block)
    TK = _pick_block(n_pad, kv_block)

    if small_vmem:
        # v7x has 2 TensorCores: keep B * q_tiles >= 2 so both get work.
        while (TQ > 128 and B * (n_pad // TQ) < 2
               and (TQ // 2) % 128 == 0 and n_pad % (TQ // 2) == 0):
            TQ //= 2

    # ---- kernel A: RMSNorm + to_qkv ------------------------------------------
    qkv = pl.pallas_call(
        _qkv_kernel,
        out_shape=jax.ShapeDtypeStruct((B, 3 * hidden, n_pad), jnp.bfloat16),
        grid=(B, n_pad // TN),
        in_specs=[
            pl.BlockSpec((None, C, TN), lambda b, i: (b, 0, i)),          # x
            pl.BlockSpec((C, 1), lambda b, i: (0, 0)),                    # g (sqrt(C) folded)
            pl.BlockSpec((C, 3 * hidden), lambda b, i: (0, 0)),           # w_qkv (scale folded)
        ],
        out_specs=pl.BlockSpec((None, 3 * hidden, TN), lambda b, i: (b, 0, i)),
        compiler_params=pltpu.CompilerParams(
            dimension_semantics=("parallel", "parallel"),
            vmem_limit_bytes=vmem_a),
    )(x_bcn, g, w_qkv)

    # (B, 3*hidden, N) -> (B, 3, heads, dh, N): free metadata reshape.
    qkv_r = qkv.reshape(B, 3, heads, dh, n_pad)

    # ---- kernel B: flash attention + to_out ----------------------------------
    flash = functools.partial(_flash_kernel, tk=TK, n_valid=N, mask_kv=needs_mask)
    y_bcn = pl.pallas_call(
        flash,
        out_shape=jax.ShapeDtypeStruct((B, C, n_pad), jnp.float32),
        grid=(B, n_pad // TQ, n_pad // TK),
        in_specs=[
            pl.BlockSpec((None, None, heads, dh, TQ),
                         lambda b, qi, ki: (b, 0, 0, 0, qi)),             # q
            pl.BlockSpec((None, None, heads, dh, TK),
                         lambda b, qi, ki: (b, 1, 0, 0, ki)),             # k
            pl.BlockSpec((None, None, heads, dh, TK),
                         lambda b, qi, ki: (b, 2, 0, 0, ki)),             # v
            pl.BlockSpec((heads, dh, num_mem_kv), lambda b, qi, ki: (0, 0, 0)),  # mem_k
            pl.BlockSpec((heads, dh, num_mem_kv), lambda b, qi, ki: (0, 0, 0)),  # mem_v
            pl.BlockSpec((hidden, C), lambda b, qi, ki: (0, 0)),          # w_out (hidden, C)
            pl.BlockSpec((C, 1), lambda b, qi, ki: (0, 0)),               # b_out
        ],
        out_specs=pl.BlockSpec((None, C, TQ), lambda b, qi, ki: (b, 0, qi)),
        scratch_shapes=[
            pltpu.VMEM((heads, dh, TQ), jnp.float32),   # acc
            pltpu.VMEM((heads, 1, TQ), jnp.float32),    # running max
            pltpu.VMEM((heads, 1, TQ), jnp.float32),    # running sum
        ],
        compiler_params=pltpu.CompilerParams(
            dimension_semantics=("parallel", "parallel", "arbitrary"),
            vmem_limit_bytes=vmem_b),
    )(qkv_r, qkv_r, qkv_r, mem_k, mem_v, w_out, b_out)

    # (B, C, N) is already channel-major -> NCHW with a pure reshape.
    if needs_mask:
        y_bcn = y_bcn[:, :, :N]
    return y_bcn.reshape(B, C, H, W)


# -----------------------------------------------------------------------------
# Pure-JAX f32 reference mirroring the PyTorch forward (NCHW semantics)
# -----------------------------------------------------------------------------
def attention_reference(x, params, *, heads, dim_head, num_mem_kv):
    B, C, H, W = x.shape
    N = H * W
    hidden = heads * dim_head

    # RMSNorm
    norm = jnp.sqrt(jnp.sum(x * x, axis=1, keepdims=True))
    xn = x / jnp.maximum(norm, 1e-12) * params["g"].reshape(1, C, 1, 1) * (C ** 0.5)

    # to_qkv 1x1 conv:  w_qkv is (C, 3*hidden) == conv weight (3*hidden, C).T
    xf = xn.reshape(B, C, N)
    qkv = jnp.einsum("co,bcn->bon", params["w_qkv"], xf)
    q, k, v = jnp.split(qkv, 3, axis=1)

    def to_heads(t):  # 'b (h c) n -> b h n c'
        return jnp.transpose(t.reshape(B, heads, dim_head, N), (0, 1, 3, 2))

    q, k, v = map(to_heads, (q, k, v))
    mk = jnp.broadcast_to(params["mem_k"][None], (B, heads, num_mem_kv, dim_head))
    mv = jnp.broadcast_to(params["mem_v"][None], (B, heads, num_mem_kv, dim_head))
    k = jnp.concatenate([mk, k], axis=2)
    v = jnp.concatenate([mv, v], axis=2)

    sim = jnp.einsum("bhid,bhjd->bhij", q, k) * (dim_head ** -0.5)
    attn = jax.nn.softmax(sim, axis=-1)
    out = jnp.einsum("bhij,bhjd->bhid", attn, v)

    # 'b h (x y) d -> b (h d) x y'
    out = jnp.transpose(out, (0, 1, 3, 2)).reshape(B, hidden, H, W)

    y = jnp.einsum("hc,bhxy->bcxy", params["w_out"], out) + \
        params["b_out"].reshape(1, C, 1, 1)
    return y


# -----------------------------------------------------------------------------
if __name__ == "__main__":
    dim = 8
    heads = 4
    dim_head = 32
    num_mem_kv = 4
    hidden = heads * dim_head

    B, H, W = 2, 16, 16            # N = 256 tokens

    key = jax.random.PRNGKey(0)
    k_x, k_qkv, k_mem, k_wo, k_bo = jax.random.split(key, 5)

    x = jax.random.normal(k_x, (B, dim, H, W), dtype=jnp.float32)

    params = {
        # RMSNorm gain (nn.Parameter(torch.ones(1, dim, 1, 1)))
        "g": jnp.ones((1, dim), dtype=jnp.float32),
        # to_qkv: Conv2d(dim, 3*hidden, 1, bias=False) — stored transposed (C, 3*hidden)
        "w_qkv": jax.random.normal(k_qkv, (dim, 3 * hidden), dtype=jnp.float32) * 0.05,
        # mem_kv: nn.Parameter(torch.randn(2, heads, num_mem_kv, dim_head))
        "mem_k": jax.random.normal(k_mem, (heads, num_mem_kv, dim_head), dtype=jnp.float32),
        "mem_v": jax.random.normal(jax.random.fold_in(k_mem, 1),
                                   (heads, num_mem_kv, dim_head), dtype=jnp.float32),
        # to_out: Conv2d(hidden, dim, 1) — stored transposed (hidden, C) + bias
        "w_out": jax.random.normal(k_wo, (hidden, dim), dtype=jnp.float32) * 0.05,
        "b_out": jax.random.normal(k_bo, (1, dim), dtype=jnp.float32) * 0.01,
    }

    y_ref = attention_reference(x, params, heads=heads, dim_head=dim_head,
                                num_mem_kv=num_mem_kv)

    # Run 1: small 128 blocks so the (B, q_tiles, kv_tiles) grid and the online
    # softmax across KV tiles are actually exercised at this small N.
    y_small = attention_forward(x, params, heads=heads, dim_head=dim_head,
                                num_mem_kv=num_mem_kv, q_block=128, kv_block=128,
                                n_block=128)
    y_small = jax.block_until_ready(y_small)

    # Run 2: production defaults (generation-aware tile selection).
    y_big = attention_forward(x, params, heads=heads, dim_head=dim_head,
                              num_mem_kv=num_mem_kv)
    y_big = jax.block_until_ready(y_big)

    assert y_small.shape == (B, dim, H, W), y_small.shape
    assert y_big.shape == (B, dim, H, W), y_big.shape
    # bf16 MXU operands + approx reciprocal -> looser tolerance than pure f32.
    err_small = float(jnp.max(jnp.abs(y_small - y_ref)))
    err_big = float(jnp.max(jnp.abs(y_big - y_ref)))
    assert jnp.allclose(y_small, y_ref, rtol=5e-2, atol=5e-3), err_small
    assert jnp.allclose(y_big, y_ref, rtol=5e-2, atol=5e-3), err_big

    print("KERNEL_OK")
</pallas_src>

<mosaic_0001>
module attributes {stable_mosaic.version = 11 : i64} {
  func.func @_qkv_kernel(%arg0: i32, %arg1: i32, %arg2: memref<1x8x128xf32, #tpu.memory_space<vmem>>, %arg3: memref<8x1xf32, #tpu.memory_space<vmem>>, %arg4: memref<8x384xbf16, #tpu.memory_space<vmem>>, %arg5: memref<1x384x128xbf16, #tpu.memory_space<vmem>>) attributes {dimension_semantics = [#tpu.dimension_semantics<parallel>, #tpu.dimension_semantics<parallel>], iteration_bounds = array<i64: 2, 2>, scalar_prefetch = 0 : i64, scratch_operands = 0 : i64, tpu.core_type = #tpu.core_type<tc>, window_params = [{transform_indices = @transform_0, window_bounds = array<i64: 1, 8, 128>}, {pipeline_mode = #tpu.pipeline_mode<synchronous>, transform_indices = @transform_1, window_bounds = array<i64: 8, 1>}, {pipeline_mode = #tpu.pipeline_mode<synchronous>, transform_indices = @transform_2, window_bounds = array<i64: 8, 384>}, {transform_indices = @transform_3, window_bounds = array<i64: 1, 384, 128>}]} {
    %c0 = arith.constant 0 : index
    %c0_0 = arith.constant 0 : index
    %c0_1 = arith.constant 0 : index
    %0 = vector.load %arg2[%c0, %c0_0, %c0_1] : memref<1x8x128xf32, #tpu.memory_space<vmem>>, vector<1x8x128xf32>
    %1 = vector.shape_cast %0 : vector<1x8x128xf32> to vector<8x128xf32>
    %2 = arith.mulf %1, %1 : vector<8x128xf32>
    %cst = arith.constant dense<0.000000e+00> : vector<128xf32>
    %3 = vector.multi_reduction <add>, %2, %cst [0] : vector<8x128xf32> to vector<128xf32>
    %4 = vector.shape_cast %3 : vector<128xf32> to vector<1x128xf32>
    %cst_2 = arith.constant 1.000000e-24 : f32
    %5 = vector.broadcast %cst_2 : f32 to vector<1x128xf32>
    %6 = arith.maximumf %4, %5 : vector<1x128xf32>
    %7 = math.rsqrt %6 : vector<1x128xf32>
    %8 = vector.broadcast %7 : vector<1x128xf32> to vector<8x128xf32>
    %9 = arith.mulf %1, %8 : vector<8x128xf32>
    %c0_3 = arith.constant 0 : index
    %c0_4 = arith.constant 0 : index
    %10 = vector.load %arg3[%c0_3, %c0_4] : memref<8x1xf32, #tpu.memory_space<vmem>>, vector<8x1xf32>
    %11 = vector.broadcast %10 : vector<8x1xf32> to vector<8x128xf32>
    %12 = arith.mulf %9, %11 : vector<8x128xf32>
    %13 = arith.truncf %12 : vector<8x128xf32> to vector<8x128xbf16>
    %c0_5 = arith.constant 0 : index
    %c0_6 = arith.constant 0 : index
    %14 = vector.load %arg4[%c0_5, %c0_6] : memref<8x384xbf16, #tpu.memory_space<vmem>>, vector<8x384xbf16>
    %cst_7 = arith.constant dense<0.000000e+00> : vector<384x128xf32>
    %15 = tpu.matmul %14, %13, %cst_7 {dimension_numbers = #tpu.dot_dimension_numbers<[0], [0], [1], [1], [0, 1, 1, 1], [], []>} : vector<8x384xbf16>, vector<8x128xbf16>, vector<384x128xf32> -> vector<384x128xf32>
    %16 = arith.truncf %15 : vector<384x128xf32> to vector<384x128xbf16>
    %c0_8 = arith.constant 0 : index
    %c0_9 = arith.constant 0 : index
    %c0_10 = arith.constant 0 : index
    %17 = vector.load %arg5[%c0_8, %c0_9, %c0_10] : memref<1x384x128xbf16, #tpu.memory_space<vmem>>, vector<1x384x128xbf16>
    %18 = vector.shape_cast %17 : vector<1x384x128xbf16> to vector<384x128xbf16>
    %19 = vector.shape_cast %16 : vector<384x128xbf16> to vector<1x384x128xbf16>
    tpu.vector_store %arg5[%c0_8, %c0_9, %c0_10], %19 {strides = array<i32>} : memref<1x384x128xbf16, #tpu.memory_space<vmem>>, vector<1x384x128xbf16>,
    return
  }
  func.func @transform_0(%arg0: i32, %arg1: i32) -> (i32, i32, i32) {
    %c0_i32 = arith.constant 0 : i32
    %c0_i32_0 = arith.constant 0 : i32
    return %arg0, %c0_i32, %arg1 : i32, i32, i32
  }
  func.func @transform_1(%arg0: i32, %arg1: i32) -> (i32, i32) {
    %c0_i32 = arith.constant 0 : i32
    %c0_i32_0 = arith.constant 0 : i32
    %c0_i32_1 = arith.constant 0 : i32
    return %c0_i32, %c0_i32_0 : i32, i32
  }
  func.func @transform_2(%arg0: i32, %arg1: i32) -> (i32, i32) {
    %c0_i32 = arith.constant 0 : i32
    %c0_i32_0 = arith.constant 0 : i32
    %c0_i32_1 = arith.constant 0 : i32
    return %c0_i32, %c0_i32_0 : i32, i32
  }
  func.func @transform_3(%arg0: i32, %arg1: i32) -> (i32, i32, i32) {
    %c0_i32 = arith.constant 0 : i32
    %c0_i32_0 = arith.constant 0 : i32
    return %arg0, %c0_i32, %arg1 : i32, i32, i32
  }
}

</mosaic_0001>

<llo_original>
// kernel: tpu_custom_call.1
$region0: #{tpu_custom_call.1}
  #allocation0 [shape = 'u32[]', space=smem, size = 0x4, offset = 0x4, fixed_abs, tag = 'smem constant byte address 0x4 - core index']
  #allocation1 [shape = 'u32[144,128]{1,0:T(1,128)}', space=vmem, size = 0x12000, scoped, tag = 'internal scratch']
  %s0 = inlined_call_operand.hbm [shape: f32[2,8,256], index: 0, kind: input, shape index: {}]
  %s1 = inlined_call_operand.vmem [shape: f32[8,1], index: 1, kind: input, shape index: {}]
  %s2 = inlined_call_operand.vmem [shape: bf16[8,384], index: 2, kind: input, shape index: {}]
  %s3 = inlined_call_operand.hbm [shape: bf16[2,384,256], index: 3, kind: output, shape index: {}]
  %s4 = sld [smem:[#allocation0]]
  $region49: #{tpu_custom_call.1} parent=0
    _
  %s6 = ssub.s32 1, %s4
  %s7 = scalar_select 0, %s6, %s4
  $region1: #{tpu_custom_call.1} parent=0
    #allocation2 [shape = 'u8[8192]{0}', space=vmem, size = 0x2000, scoped, tag = 'input window, operand 0']
    #allocation3 [shape = 's32[2]{0}', space=sflag, size = 0x8, scoped, tag = 'scoped memory for tpu_custom_call.1']
    #allocation4 [shape = 's32[2]{0}', space=sflag, size = 0x8, scoped, tag = 'scoped memory for tpu_custom_call.1']
    #allocation5 [shape = 'u8[196608]{0}', space=vmem, size = 0x30000, scoped, tag = 'output window, operand 0']
    %8 = vsyncpa [#allocation3], 0
    %s9 = scalar_lea.sflag [#allocation3], 1
    %10 = vsyncpa %s9, 0
    %11 = vsyncpa [#allocation4], 0
    %s12 = scalar_lea.sflag [#allocation4], 1
    %13 = vsyncpa %s12, 0
    loop: start=0, step=1, limit=6
    $region2: #{tpu_custom_call.1} parent=1 // loop_pre_header
      _
    $region3: #{tpu_custom_call.1} parent=1 // loop_header
      %s15 = sphi 0, %s19
      %p16 = scmp.ge.s32.totalorder %s15, 6
      %s22 = sphi 0, %s34
      %s23 = sphi 0, %s30
      %s24 = sphi 0, %s22
      %s25 = sphi 0, %s23
      %s26 = sphi 0, %s24
      %s27 = sphi 0, %s25
      %s39 = sphi 0, %s41
      %s42 = sphi 0, %s39
      %s43 = sphi 0, %s42
      %s59 = sphi 0, %s43
      %s63 = sphi 0, %s63
      %s65 = sphi 0, %s63
      %s66 = sphi 0, %s65
      %s80 = sphi 0, %s66
      %s84 = sphi 0, %s84
      %s86 = sphi 0, %s84
      %s87 = sphi 0, %s86
      %s101 = sphi 0, %s87
      %s109 = sphi 0, %s111
      %s112 = sphi 0, %s109
      %s113 = sphi 0, %s112
      %s129 = sphi 0, %s113
    $region4: #{tpu_custom_call.1} parent=1 // loop_header_branch
      %18 = sbr.rel (%p16) target = $region8
    $region5: #{tpu_custom_call.1} parent=1 // loop_body
      %s20 = ssub.s32 %s15, 1
      %s21 = ssub.s32 %s15, 2
      %s28 = sadd.s32 1, %s23
      %p29 = scmp.ge.s32.totalorder %s28, 2
      %s30 = scalar_select %p29, 0, %s28
      %s31 = sadd.s32 1, %s22
      %s32 = scalar_select %p29, %s31, %s22
      %p33 = scmp.ge.s32.totalorder %s32, 2
      %s34 = scalar_select %p33, 0, %s32
      %s35 = ssub.s32 %s22, %s34
      %s36 = ssub.s32 %s23, %s30
      %s37 = sor.u32 %s35, %s36
      %p38 = scmp.eq.s32.totalorder %s37, 0
      %s40 = sadd.s32 %s39, 1
      %s41 = scalar_select %p38, %s39, %s40
      %p44 = pneg %p38
      %p45 = scmp.eq.s32.totalorder %s15, 3
      %p46 = por %p44, %p45
      %p47 = scmp.ne.s32.totalorder %s39, %s42
      %p48 = scmp.eq.s32.totalorder %s15, 0
      %p49 = por %p47, %p48
      %p50 = scmp.ne.s32.totalorder %s39, %s42
      %p51 = scmp.eq.s32.totalorder %s20, 3
      %p52 = por %p50, %p51
      %p53 = scmp.ne.s32.totalorder %s42, %s43
      %p54 = scmp.eq.s32.totalorder %s20, 0
      %p55 = por %p53, %p54
      %p56 = scmp.ne.s32.totalorder %s42, %s43
      %p57 = scmp.eq.s32.totalorder %s21, 3
      %p58 = por %p56, %p57
      %p60 = scmp.ne.s32.totalorder %s43, %s59
      %p61 = scmp.eq.s32.totalorder %s21, 0
      %p62 = por %p60, %p61
      %s64 = sadd.s32 %s63, 1
      %p67 = scmp.eq.s32.totalorder %s15, 3
      %p68 = scmp.ne.s32.totalorder %s63, %s65
      %p69 = scmp.eq.s32.totalorder %s15, 0
      %p70 = por %p68, %p69
      %p71 = scmp.ne.s32.totalorder %s63, %s65
      %p72 = scmp.eq.s32.totalorder %s20, 3
      %p73 = por %p71, %p72
      %p74 = scmp.ne.s32.totalorder %s65, %s66
      %p75 = scmp.eq.s32.totalorder %s20, 0
      %p76 = por %p74, %p75
      %p77 = scmp.ne.s32.totalorder %s65, %s66
      %p78 = scmp.eq.s32.totalorder %s21, 3
      %p79 = por %p77, %p78
      %p81 = scmp.ne.s32.totalorder %s66, %s80
      %p82 = scmp.eq.s32.totalorder %s21, 0
      %p83 = por %p81, %p82
      %s85 = sadd.s32 %s84, 1
      %p88 = scmp.eq.s32.totalorder %s15, 3
      %p89 = scmp.ne.s32.totalorder %s84, %s86
      %p90 = scmp.eq.s32.totalorder %s15, 0
      %p91 = por %p89, %p90
      %p92 = scmp.ne.s32.totalorder %s84, %s86
      %p93 = scmp.eq.s32.totalorder %s20, 3
      %p94 = por %p92, %p93
      %p95 = scmp.ne.s32.totalorder %s86, %s87
      %p96 = scmp.eq.s32.totalorder %s20, 0
      %p97 = por %p95, %p96
      %p98 = scmp.ne.s32.totalorder %s86, %s87
      %p99 = scmp.eq.s32.totalorder %s21, 3
      %p100 = por %p98, %p99
      %p102 = scmp.ne.s32.totalorder %s87, %s101
      %p103 = scmp.eq.s32.totalorder %s21, 0
      %p104 = por %p102, %p103
      %s105 = ssub.s32 %s22, %s34
      %s106 = ssub.s32 %s23, %s30
      %s107 = sor.u32 %s105, %s106
      %p108 = scmp.eq.s32.totalorder %s107, 0
      %s110 = sadd.s32 %s109, 1
      %s111 = scalar_select %p108, %s109, %s110
      %p114 = pneg %p108
      %p115 = scmp.eq.s32.totalorder %s15, 3
      %p116 = por %p114, %p115
      %p117 = scmp.ne.s32.totalorder %s109, %s112
      %p118 = scmp.eq.s32.totalorder %s15, 0
      %p119 = por %p117, %p118
      %p120 = scmp.ne.s32.totalorder %s109, %s112
      %p121 = scmp.eq.s32.totalorder %s20, 3
      %p122 = por %p120, %p121
      %p123 = scmp.ne.s32.totalorder %s112, %s113
      %p124 = scmp.eq.s32.totalorder %s20, 0
      %p125 = por %p123, %p124
      %p126 = scmp.ne.s32.totalorder %s112, %s113
      %p127 = scmp.eq.s32.totalorder %s21, 3
      %p128 = por %p126, %p127
      %p130 = scmp.ne.s32.totalorder %s113, %s129
      %p131 = scmp.eq.s32.totalorder %s21, 0
      %p132 = por %p130, %p131
      %p133 = scmp.le.s32.totalorder 1, %s15
      %p134 = scmp.lt.s32.totalorder %s15, 5
      %p135 = pnand %p133, %p134
      %p136 = pneg %p135
      // Predicated region
      $region9: #{tpu_custom_call.1} parent=5 // pred_check
        _
      $region10: #{tpu_custom_call.1} parent=5 // pred_check_branch
        %138 = sbr.rel (%p135) target = $region12
      $region11: #{tpu_custom_call.1} parent=5 // pred_region
        %s139 = ssub.s32 %s15, 1
        // Predicated region
        $region13: #{tpu_custom_call.1} parent=11 // pred_check
          %p140 = pneg %p76
        $region14: #{tpu_custom_call.1} parent=11 // pred_check_branch
          %142 = sbr.rel (%p140) target = $region16
        $region15: #{tpu_custom_call.1} parent=11 // pred_region
          _
        $region16: #{tpu_custom_call.1} parent=11 // pred_fallthru
          _
        // Predicated region
        $region17: #{tpu_custom_call.1} parent=11 // pred_check
          %p143 = pneg %p97
        $region18: #{tpu_custom_call.1} parent=11 // pred_check_branch
          %145 = sbr.rel (%p143) target = $region20
        $region19: #{tpu_custom_call.1} parent=11 // pred_region
          _
        $region20: #{tpu_custom_call.1} parent=11 // pred_fallthru
          _
      $region12: #{tpu_custom_call.1} parent=5 // pred_fallthru
        _
      %p146 = scmp.lt.s32.totalorder %s15, 4
      // Predicated region
      $region21: #{tpu_custom_call.1} parent=5 // pred_check
        %p147 = pneg %p146
      $region22: #{tpu_custom_call.1} parent=5 // pred_check_branch
        %149 = sbr.rel (%p147) target = $region24
      $region23: #{tpu_custom_call.1} parent=5 // pred_region
        // Predicated region
        $region25: #{tpu_custom_call.1} parent=23 // pred_check
          %p150 = pneg %p49
        $region26: #{tpu_custom_call.1} parent=23 // pred_check_branch
          %152 = sbr.rel (%p150) target = $region28
        $region27: #{tpu_custom_call.1} parent=23 // pred_region
          %s153 = sand.u32 %s39, 1
          %s154 = scalar_lea.sflag [#allocation3], %s153
          %s155 = sand.u32 %s39, 1
          %s156 = smul.addr %s155, 8
          %s157 = scalar_lea.vmem [#allocation2], %s156
          %s159 = ssub.s32 128, 128
          %160 = vsyncadd %s154, %s159
          %s161 = smul.addr %s22, 2
          %s162 = sadd.s32 %s23, %s161
          %s163 = smul.addr %s162, 128
          %s164 = scalar_lea.hbm %s0, %s163
          %s166 = sshll.u32 %s157, 4
          %s167 = int_to_ptr.vmem [resolvable:$true] %s166
          %169 = dma.hbm_to_vmem [thread:$0]  %s164, 128, %s167, %s154
        $region28: #{tpu_custom_call.1} parent=23 // pred_fallthru
          _
      $region24: #{tpu_custom_call.1} parent=5 // pred_fallthru
        _
      %p170 = scmp.le.s32.totalorder 1, %s15
      %p171 = scmp.lt.s32.totalorder %s15, 5
      %p172 = pnand %p170, %p171
      %p173 = pneg %p172
      // Predicated region
      $region29: #{tpu_custom_call.1} parent=5 // pred_check
        _
      $region30: #{tpu_custom_call.1} parent=5 // pred_check_branch
        %175 = sbr.rel (%p172) target = $region32
      $region31: #{tpu_custom_call.1} parent=5 // pred_region
        %s176 = ssub.s32 %s15, 1
        %s177 = sand.u32 %s42, 1
        %s178 = scalar_lea.sflag [#allocation3], %s177
        %s179 = sand.u32 %s42, 1
        %s180 = smul.addr %s179, 8
        %s181 = scalar_lea.vmem [#allocation2], %s180
        // Predicated region
        $region33: #{tpu_custom_call.1} parent=31 // pred_check
          %p182 = pneg %p55
        $region34: #{tpu_custom_call.1} parent=31 // pred_check_branch
          %184 = sbr.rel (%p182) target = $region36
        $region35: #{tpu_custom_call.1} parent=31 // pred_region
          %185 = dma.done %s178, 128
        $region36: #{tpu_custom_call.1} parent=31 // pred_fallthru
          _
        %s186 = sand.u32 %s42, 1
        %s187 = scalar_lea.sflag [#allocation3], %s186
        %s188 = sand.u32 %s42, 1
        %s189 = smul.addr %s188, 8
        %s190 = scalar_lea.vmem [#allocation2], %s189
        %p191 = pneg %p55
        %p192 = pneg %p52
        %p193 = pneg %p76
        %p194 = pneg %p73
        %p195 = pneg %p97
        %p196 = pneg %p94
        %p197 = pneg %p125
        %p198 = pneg %p122
        %s199 = sand.u32 %s112, 1
        %s200 = scalar_lea.sflag [#allocation4], %s199
        %s201 = sand.u32 %s112, 1
        %s202 = smul.addr %s201, 192
        %s203 = scalar_lea.vmem [#allocation5], %s202
        %v205 = vld [vmem:[%s181] sm:$0xff]
        %v206 = vmul.f32 %v205, %v205
        %v207 = vrot.slane %v206, 4
        %v208 = vadd.f32 %v206, %v207
        %v209 = vrot.slane %v208, 2
        %v210 = vadd.f32 %v208, %v209
        %v211 = vrot.slane %v210, 1
        %v212 = vadd.f32 %v210, %v211
        %v213 = vmax.f32 %v212, 1e-24
        %v214 = vrsqrt.pop %v213
        %v215 = vmul.f32 %v205, %v214
        %v216 = vld [vmem:[%s1] sm:$0xff]
        %218 = vset.pattern.permute.xlu0 0
        %219 = vperm.xlu0 %218, %v216
        %v220 = vpop.permute.xlu0 %219
        %v222 = vmul.f32 %v215, %v220
        %v223 = vpack.c.bf16 %v222, %v222
        %v224 = vld [vmem:[%s2] sm:$0xff]
        %v225 = vld [vmem:[%s2 + $0x8] sm:$0xf]
        %v228 = vunpack.c.l.b16 %v224
        %v229 = vunpack.c.h.b16 %v224
        %v230 = vunpack.c.l.b16 %v225
        %v231 = vpack.c.b16 %v228, %v228
        %v232 = vpack.c.b16 %v229, %v229
        %v233 = vpack.c.b16 %v230, %v230
        %237 = vxpose.xlu0.c.b16.start [1/8] %v231, 128
        %238 = vxpose.xlu0.c.b16.cont [2/8] 0, 128
        %239 = vxpose.xlu0.c.b16.cont [3/8] 0, 128
        %240 = vxpose.xlu0.c.b16.cont [4/8] 0, 128
        %241 = vxpose.xlu0.c.b16.cont [5/8] 0, 128
        %242 = vxpose.xlu0.c.b16.cont [6/8] 0, 128
        %243 = vxpose.xlu0.c.b16.cont [7/8] 0, 128
        %244 = vxpose.xlu0.c.b16.end [8/8] 0, 128
        %v245 = vpop.trf.xlu0
        %v246 = vpop.trf.xlu0
        %v247 = vpop.trf.xlu0
        %v248 = vpop.trf.xlu0
        %v249 = vpop.trf.xlu0
        %v250 = vpop.trf.xlu0
        %v251 = vpop.trf.xlu0
        %v252 = vpop.trf.xlu0
        %253 = vxpose.xlu0.c.b16.start [1/8] %v232, 128
        %254 = vxpose.xlu0.c.b16.cont [2/8] 0, 128
        %255 = vxpose.xlu0.c.b16.cont [3/8] 0, 128
        %256 = vxpose.xlu0.c.b16.cont [4/8] 0, 128
        %257 = vxpose.xlu0.c.b16.cont [5/8] 0, 128
        %258 = vxpose.xlu0.c.b16.cont [6/8] 0, 128
        %259 = vxpose.xlu0.c.b16.cont [7/8] 0, 128
        %260 = vxpose.xlu0.c.b16.end [8/8] 0, 128
        %v261 = vpop.trf.xlu0
        %v262 = vpop.trf.xlu0
        %v263 = vpop.trf.xlu0
        %v264 = vpop.trf.xlu0
        %v265 = vpop.trf.xlu0
        %v266 = vpop.trf.xlu0
        %v267 = vpop.trf.xlu0
        %v268 = vpop.trf.xlu0
        %269 = vxpose.xlu0.c.b16.start [1/8] %v233, 128
        %270 = vxpose.xlu0.c.b16.cont [2/8] 0, 128
        %271 = vxpose.xlu0.c.b16.cont [3/8] 0, 128
        %272 = vxpose.xlu0.c.b16.cont [4/8] 0, 128
        %273 = vxpose.xlu0.c.b16.cont [5/8] 0, 128
        %274 = vxpose.xlu0.c.b16.cont [6/8] 0, 128
        %275 = vxpose.xlu0.c.b16.cont [7/8] 0, 128
        %276 = vxpose.xlu0.c.b16.end [8/8] 0, 128
        %v277 = vpop.trf.xlu0
        %v278 = vpop.trf.xlu0
        %v279 = vpop.trf.xlu0
        %v280 = vpop.trf.xlu0
        %v281 = vpop.trf.xlu0
        %v282 = vpop.trf.xlu0
        %v283 = vpop.trf.xlu0
        %v284 = vpop.trf.xlu0
        %vm285 = vcmask 64512
        %v287 = vsel %vm285, %v245, 0
        %v290 = vsel %vm285, %v246, 0
        %v293 = vsel %vm285, %v247, 0
        %v296 = vsel %vm285, %v248, 0
        %v299 = vsel %vm285, %v249, 0
        %v302 = vsel %vm285, %v250, 0
        %v305 = vsel %vm285, %v251, 0
        %v308 = vsel %vm285, %v252, 0
        %v311 = vsel %vm285, %v261, 0
        %v314 = vsel %vm285, %v262, 0
        %v317 = vsel %vm285, %v263, 0
        %v320 = vsel %vm285, %v264, 0
        %v323 = vsel %vm285, %v265, 0
        %v326 = vsel %vm285, %v266, 0
        %v329 = vsel %vm285, %v267, 0
        %v332 = vsel %vm285, %v268, 0
        %v335 = vsel %vm285, %v277, 0
        %v338 = vsel %vm285, %v278, 0
        %v341 = vsel %vm285, %v279, 0
        %v344 = vsel %vm285, %v280, 0
        %v347 = vsel %vm285, %v281, 0
        %v350 = vsel %vm285, %v282, 0
        %v353 = vsel %vm285, %v283, 0
        %v356 = vsel %vm285, %v284, 0
        %vm358 = vcmask 1043456
        %v360 = vsel %vm358, %v223, 0
        %362 = vmatprep.subr.bf16.mxu0 0
        %363 = vmatpush1.bf16.msra.mxu0 0
        %364 = vmatprep.subr.bf16.mxu0 0
        %365 = vmatpush1.bf16.msra.mxu0 0
        %366 = vmatprep.subr.bf16.mxu0 0
        %367 = vmatpush1.bf16.msra.mxu0 0
        %368 = vmatprep.subr.bf16.mxu0 0
        %369 = vmatpush1.bf16.msra.mxu0 0
        %370 = vmatprep.subr.bf16.mxu0 0
        %371 = vmatpush1.bf16.msra.mxu0 0
        %372 = vmatprep.subr.bf16.mxu0 0
        %373 = vmatpush1.bf16.msra.mxu0 0
        %374 = vmatprep.subr.bf16.mxu0 0
        %375 = vmatpush1.bf16.msra.mxu0 0
        %376 = vmatprep.subr.bf16.mxu0 0
        %377 = vmatpush1.bf16.msra.mxu0 %v360
        %378 = vmatprep.subr.bf16.mxu0 0
        %379 = vmatpush2.bf16.msra.mxu0 0
        %380 = vmatprep.subr.bf16.mxu0 0
        %381 = vmatpush2.bf16.msra.mxu0 0
        %382 = vmatprep.subr.bf16.mxu0 0
        %383 = vmatpush2.bf16.msra.mxu0 0
        %384 = vmatprep.subr.bf16.mxu0 0
        %385 = vmatpush2.bf16.msra.mxu0 0
        %386 = vmatprep.subr.bf16.mxu0 0
        %387 = vmatpush2.bf16.msra.mxu0 0
        %388 = vmatprep.subr.bf16.mxu0 0
        %389 = vmatpush2.bf16.msra.mxu0 0
        %390 = vmatprep.subr.bf16.mxu0 0
        %391 = vmatpush2.bf16.msra.mxu0 0
        %392 = vmatprep.subr.bf16.mxu0 0
        %393 = vmatpush2.bf16.msra.mxu0 0
        %394 = vmatprep.mubr.bf16.mxu0 0
        %395 = vmatmul.mubr.bf16.gmra.mxu0 %v287
        %v396 = vpop.f32.mrf.mxu0
        %v397 = vadd.f32 0.0, %v396
        %v398 = vpop.f32.mrf.mxu0
        %v399 = vpop.f32.mrf.mxu0
        %v400 = vadd.f32 0.0, %v399
        %v401 = vpop.f32.mrf.mxu0
        %402 = vmatprep.mubr.bf16.mxu0 0
        %403 = vmatmul.mubr.bf16.gmra.mxu0 %v290
        %v404 = vpop.f32.mrf.mxu0
        %v405 = vadd.f32 0.0, %v404
        %v406 = vpop.f32.mrf.mxu0
        %v407 = vpop.f32.mrf.mxu0
        %v408 = vadd.f32 0.0, %v407
        %v409 = vpop.f32.mrf.mxu0
        %410 = vmatprep.mubr.bf16.mxu0 0
        %411 = vmatmul.mubr.bf16.gmra.mxu0 %v293
        %v412 = vpop.f32.mrf.mxu0
        %v413 = vadd.f32 0.0, %v412
        %v414 = vpop.f32.mrf.mxu0
        %v415 = vpop.f32.mrf.mxu0
        %v416 = vadd.f32 0.0, %v415
        %v417 = vpop.f32.mrf.mxu0
        %418 = vmatprep.mubr.bf16.mxu0 0
        %419 = vmatmul.mubr.bf16.gmra.mxu0 %v296
        %v420 = vpop.f32.mrf.mxu0
        %v421 = vadd.f32 0.0, %v420
        %v422 = vpop.f32.mrf.mxu0
        %v423 = vpop.f32.mrf.mxu0
        %v424 = vadd.f32 0.0, %v423
        %v425 = vpop.f32.mrf.mxu0
        %426 = vmatprep.mubr.bf16.mxu0 0
        %427 = vmatmul.mubr.bf16.gmra.mxu0 %v299
        %v428 = vpop.f32.mrf.mxu0
        %v429 = vadd.f32 0.0, %v428
        %v430 = vpop.f32.mrf.mxu0
        %v431 = vpop.f32.mrf.mxu0
        %v432 = vadd.f32 0.0, %v431
        %v433 = vpop.f32.mrf.mxu0
        %434 = vmatprep.mubr.bf16.mxu0 0
        %435 = vmatmul.mubr.bf16.gmra.mxu0 %v302
        %v436 = vpop.f32.mrf.mxu0
        %v437 = vadd.f32 0.0, %v436
        %v438 = vpop.f32.mrf.mxu0
        %v439 = vpop.f32.mrf.mxu0
        %v440 = vadd.f32 0.0, %v439
        %v441 = vpop.f32.mrf.mxu0
        %442 = vmatprep.mubr.bf16.mxu0 0
        %443 = vmatmul.mubr.bf16.gmra.mxu0 %v305
        %v444 = vpop.f32.mrf.mxu0
        %v445 = vadd.f32 0.0, %v444
        %v446 = vpop.f32.mrf.mxu0
        %v447 = vpop.f32.mrf.mxu0
        %v448 = vadd.f32 0.0, %v447
        %v449 = vpop.f32.mrf.mxu0
        %450 = vmatprep.mubr.bf16.mxu0 0
        %451 = vmatmul.mubr.bf16.gmra.mxu0 %v308
        %v452 = vpop.f32.mrf.mxu0
        %v453 = vadd.f32 0.0, %v452
        %v454 = vpop.f32.mrf.mxu0
        %v455 = vpop.f32.mrf.mxu0
        %v456 = vadd.f32 0.0, %v455
        %v457 = vpop.f32.mrf.mxu0
        %458 = vmatprep.mubr.bf16.mxu0 0
        %459 = vmatmul.mubr.bf16.gmra.mxu0 %v311
        %v460 = vpop.f32.mrf.mxu0
        %v461 = vadd.f32 0.0, %v460
        %v462 = vpop.f32.mrf.mxu0
        %v463 = vpop.f32.mrf.mxu0
        %v464 = vadd.f32 0.0, %v463
        %v465 = vpop.f32.mrf.mxu0
        %466 = vmatprep.mubr.bf16.mxu0 0
        %467 = vmatmul.mubr.bf16.gmra.mxu0 %v314
        %v468 = vpop.f32.mrf.mxu0
        %v469 = vadd.f32 0.0, %v468
        %v470 = vpop.f32.mrf.mxu0
        %v471 = vpop.f32.mrf.mxu0
        %v472 = vadd.f32 0.0, %v471
        %v473 = vpop.f32.mrf.mxu0
        %474 = vmatprep.mubr.bf16.mxu0 0
        %475 = vmatmul.mubr.bf16.gmra.mxu0 %v317
        %v476 = vpop.f32.mrf.mxu0
        %v477 = vadd.f32 0.0, %v476
        %v478 = vpop.f32.mrf.mxu0
        %v479 = vpop.f32.mrf.mxu0
        %v480 = vadd.f32 0.0, %v479
        %v481 = vpop.f32.mrf.mxu0
        %482 = vmatprep.mubr.bf16.mxu0 0
        %483 = vmatmul.mubr.bf16.gmra.mxu0 %v320
        %v484 = vpop.f32.mrf.mxu0
        %v485 = vadd.f32 0.0, %v484
        %v486 = vpop.f32.mrf.mxu0
        %v487 = vpop.f32.mrf.mxu0
        %v488 = vadd.f32 0.0, %v487
        %v489 = vpop.f32.mrf.mxu0
        %490 = vmatprep.mubr.bf16.mxu0 0
        %491 = vmatmul.mubr.bf16.gmra.mxu0 %v323
        %v492 = vpop.f32.mrf.mxu0
        %v493 = vadd.f32 0.0, %v492
        %v494 = vpop.f32.mrf.mxu0
        %v495 = vpop.f32.mrf.mxu0
        %v496 = vadd.f32 0.0, %v495
        %v497 = vpop.f32.mrf.mxu0
        %498 = vmatprep.mubr.bf16.mxu0 0
        %499 = vmatmul.mubr.bf16.gmra.mxu0 %v326
        %v500 = vpop.f32.mrf.mxu0
        %v501 = vadd.f32 0.0, %v500
        %v502 = vpop.f32.mrf.mxu0
        %v503 = vpop.f32.mrf.mxu0
        %v504 = vadd.f32 0.0, %v503
        %v505 = vpop.f32.mrf.mxu0
        %506 = vmatprep.mubr.bf16.mxu0 0
        %507 = vmatmul.mubr.bf16.gmra.mxu0 %v329
        %v508 = vpop.f32.mrf.mxu0
        %v509 = vadd.f32 0.0, %v508
        %v510 = vpop.f32.mrf.mxu0
        %v511 = vpop.f32.mrf.mxu0
        %v512 = vadd.f32 0.0, %v511
        %v513 = vpop.f32.mrf.mxu0
        %514 = vmatprep.mubr.bf16.mxu0 0
        %515 = vmatmul.mubr.bf16.gmra.mxu0 %v332
        %v516 = vpop.f32.mrf.mxu0
        %v517 = vadd.f32 0.0, %v516
        %v518 = vpop.f32.mrf.mxu0
        %v519 = vpop.f32.mrf.mxu0
        %v520 = vadd.f32 0.0, %v519
        %v521 = vpop.f32.mrf.mxu0
        %522 = vmatprep.mubr.bf16.mxu0 0
        %523 = vmatmul.mubr.bf16.gmra.mxu0 %v335
        %v524 = vpop.f32.mrf.mxu0
        %v525 = vadd.f32 0.0, %v524
        %v526 = vpop.f32.mrf.mxu0
        %v527 = vpop.f32.mrf.mxu0
        %v528 = vadd.f32 0.0, %v527
        %v529 = vpop.f32.mrf.mxu0
        %530 = vmatprep.mubr.bf16.mxu0 0
        %531 = vmatmul.mubr.bf16.gmra.mxu0 %v338
        %v532 = vpop.f32.mrf.mxu0
        %v533 = vadd.f32 0.0, %v532
        %v534 = vpop.f32.mrf.mxu0
        %v535 = vpop.f32.mrf.mxu0
        %v536 = vadd.f32 0.0, %v535
        %v537 = vpop.f32.mrf.mxu0
        %538 = vmatprep.mubr.bf16.mxu0 0
        %539 = vmatmul.mubr.bf16.gmra.mxu0 %v341
        %v540 = vpop.f32.mrf.mxu0
        %v541 = vadd.f32 0.0, %v540
        %v542 = vpop.f32.mrf.mxu0
        %v543 = vpop.f32.mrf.mxu0
        %v544 = vadd.f32 0.0, %v543
        %v545 = vpop.f32.mrf.mxu0
        %546 = vmatprep.mubr.bf16.mxu0 0
        %547 = vmatmul.mubr.bf16.gmra.mxu0 %v344
        %v548 = vpop.f32.mrf.mxu0
        %v549 = vadd.f32 0.0, %v548
        %v550 = vpop.f32.mrf.mxu0
        %v551 = vpop.f32.mrf.mxu0
        %v552 = vadd.f32 0.0, %v551
        %v553 = vpop.f32.mrf.mxu0
        %554 = vmatprep.mubr.bf16.mxu0 0
        %555 = vmatmul.mubr.bf16.gmra.mxu0 %v347
        %v556 = vpop.f32.mrf.mxu0
        %v557 = vadd.f32 0.0, %v556
        %v558 = vpop.f32.mrf.mxu0
        %v559 = vpop.f32.mrf.mxu0
        %v560 = vadd.f32 0.0, %v559
        %v561 = vpop.f32.mrf.mxu0
        %562 = vmatprep.mubr.bf16.mxu0 0
        %563 = vmatmul.mubr.bf16.gmra.mxu0 %v350
        %v564 = vpop.f32.mrf.mxu0
        %v565 = vadd.f32 0.0, %v564
        %v566 = vpop.f32.mrf.mxu0
        %v567 = vpop.f32.mrf.mxu0
        %v568 = vadd.f32 0.0, %v567
        %v569 = vpop.f32.mrf.mxu0
        %570 = vmatprep.mubr.bf16.mxu0 0
        %571 = vmatmul.mubr.bf16.gmra.mxu0 %v353
        %v572 = vpop.f32.mrf.mxu0
        %v573 = vadd.f32 0.0, %v572
        %v574 = vpop.f32.mrf.mxu0
        %v575 = vpop.f32.mrf.mxu0
        %v576 = vadd.f32 0.0, %v575
        %v577 = vpop.f32.mrf.mxu0
        %578 = vmatprep.mubr.bf16.mxu0 0
        %579 = vmatmul.mubr.bf16.gmra.mxu0 %v356
        %v580 = vpop.f32.mrf.mxu0
        %v581 = vadd.f32 0.0, %v580
        %v582 = vpop.f32.mrf.mxu0
        %v583 = vpop.f32.mrf.mxu0
        %v584 = vadd.f32 0.0, %v583
        %v585 = vpop.f32.mrf.mxu0
        %586 = vdwg.mxu0
        %v587 = vpack.c.bf16 %v400, %v397
        %v588 = vpack.c.bf16 %v408, %v405
        %v589 = vpack.c.bf16 %v416, %v413
        %v590 = vpack.c.bf16 %v424, %v421
        %v591 = vpack.c.bf16 %v432, %v429
        %v592 = vpack.c.bf16 %v440, %v437
        %v593 = vpack.c.bf16 %v448, %v445
        %v594 = vpack.c.bf16 %v456, %v453
        %v595 = vpack.c.bf16 %v464, %v461
        %v596 = vpack.c.bf16 %v472, %v469
        %v597 = vpack.c.bf16 %v480, %v477
        %v598 = vpack.c.bf16 %v488, %v485
        %v599 = vpack.c.bf16 %v496, %v493
        %v600 = vpack.c.bf16 %v504, %v501
        %v601 = vpack.c.bf16 %v512, %v509
        %v602 = vpack.c.bf16 %v520, %v517
        %v603 = vpack.c.bf16 %v528, %v525
        %v604 = vpack.c.bf16 %v536, %v533
        %v605 = vpack.c.bf16 %v544, %v541
        %v606 = vpack.c.bf16 %v552, %v549
        %v607 = vpack.c.bf16 %v560, %v557
        %v608 = vpack.c.bf16 %v568, %v565
        %v609 = vpack.c.bf16 %v576, %v573
        %v610 = vpack.c.bf16 %v584, %v581
        %v635 = vunpack.c.l.b16 %v587
        %v636 = vunpack.c.h.b16 %v587
        %v637 = vunpack.c.l.b16 %v588
        %v638 = vunpack.c.h.b16 %v588
        %v639 = vunpack.c.l.b16 %v589
        %v640 = vunpack.c.h.b16 %v589
        %v641 = vunpack.c.l.b16 %v590
        %v642 = vunpack.c.h.b16 %v590
        %v643 = vunpack.c.l.b16 %v591
        %v644 = vunpack.c.h.b16 %v591
        %v645 = vunpack.c.l.b16 %v592
        %v646 = vunpack.c.h.b16 %v592
        %v647 = vunpack.c.l.b16 %v593
        %v648 = vunpack.c.h.b16 %v593
        %v649 = vunpack.c.l.b16 %v594
        %v650 = vunpack.c.h.b16 %v594
        %v651 = vunpack.c.l.b16 %v595
        %v652 = vunpack.c.h.b16 %v595
        %v653 = vunpack.c.l.b16 %v596
        %v654 = vunpack.c.h.b16 %v596
        %v655 = vunpack.c.l.b16 %v597
        %v656 = vunpack.c.h.b16 %v597
        %v657 = vunpack.c.l.b16 %v598
        %v658 = vunpack.c.h.b16 %v598
        %v659 = vunpack.c.l.b16 %v599
        %v660 = vunpack.c.h.b16 %v599
        %v661 = vunpack.c.l.b16 %v600
        %v662 = vunpack.c.h.b16 %v600
        %v663 = vunpack.c.l.b16 %v601
        %v664 = vunpack.c.h.b16 %v601
        %v665 = vunpack.c.l.b16 %v602
        %v666 = vunpack.c.h.b16 %v602
        %v667 = vunpack.c.l.b16 %v603
        %v668 = vunpack.c.h.b16 %v603
        %v669 = vunpack.c.l.b16 %v604
        %v670 = vunpack.c.h.b16 %v604
        %v671 = vunpack.c.l.b16 %v605
        %v672 = vunpack.c.h.b16 %v605
        %v673 = vunpack.c.l.b16 %v606
        %v674 = vunpack.c.h.b16 %v606
        %v675 = vunpack.c.l.b16 %v607
        %v676 = vunpack.c.h.b16 %v607
        %v677 = vunpack.c.l.b16 %v608
        %v678 = vunpack.c.h.b16 %v608
        %v679 = vunpack.c.l.b16 %v609
        %v680 = vunpack.c.h.b16 %v609
        %v681 = vunpack.c.l.b16 %v610
        %v682 = vunpack.c.h.b16 %v610
        %v683 = vpack.c.b16 %v635, %v635
        %v684 = vpack.c.b16 %v636, %v636
        %v685 = vpack.c.b16 %v637, %v637
        %v686 = vpack.c.b16 %v638, %v638
        %v687 = vpack.c.b16 %v639, %v639
        %v688 = vpack.c.b16 %v640, %v640
        %v689 = vpack.c.b16 %v641, %v641
        %v690 = vpack.c.b16 %v642, %v642
        %v691 = vpack.c.b16 %v643, %v643
        %v692 = vpack.c.b16 %v644, %v644
        %v693 = vpack.c.b16 %v645, %v645
        %v694 = vpack.c.b16 %v646, %v646
        %v695 = vpack.c.b16 %v647, %v647
        %v696 = vpack.c.b16 %v648, %v648
        %v697 = vpack.c.b16 %v649, %v649
        %v698 = vpack.c.b16 %v650, %v650
        %v699 = vpack.c.b16 %v651, %v651
        %v700 = vpack.c.b16 %v652, %v652
        %v701 = vpack.c.b16 %v653, %v653
        %v702 = vpack.c.b16 %v654, %v654
        %v703 = vpack.c.b16 %v655, %v655
        %v704 = vpack.c.b16 %v656, %v656
        %v705 = vpack.c.b16 %v657, %v657
        %v706 = vpack.c.b16 %v658, %v658
        %v707 = vpack.c.b16 %v659, %v659
        %v708 = vpack.c.b16 %v660, %v660
        %v709 = vpack.c.b16 %v661, %v661
        %v710 = vpack.c.b16 %v662, %v662
        %v711 = vpack.c.b16 %v663, %v663
        %v712 = vpack.c.b16 %v664, %v664
        %v713 = vpack.c.b16 %v665, %v665
        %v714 = vpack.c.b16 %v666, %v666
        %v715 = vpack.c.b16 %v667, %v667
        %v716 = vpack.c.b16 %v668, %v668
        %v717 = vpack.c.b16 %v669, %v669
        %v718 = vpack.c.b16 %v670, %v670
        %v719 = vpack.c.b16 %v671, %v671
        %v720 = vpack.c.b16 %v672, %v672
        %v721 = vpack.c.b16 %v673, %v673
        %v722 = vpack.c.b16 %v674, %v674
        %v723 = vpack.c.b16 %v675, %v675
        %v724 = vpack.c.b16 %v676, %v676
        %v725 = vpack.c.b16 %v677, %v677
        %v726 = vpack.c.b16 %v678, %v678
        %v727 = vpack.c.b16 %v679, %v679
        %v728 = vpack.c.b16 %v680, %v680
        %v729 = vpack.c.b16 %v681, %v681
        %v730 = vpack.c.b16 %v682, %v682
        %779 = vst [vmem:[%s203] sm:$0xf] %v683
        %780 = vst [vmem:[%s203 + $0x4] sm:$0xf] %v684
        %781 = vst [vmem:[%s203 + $0x8] sm:$0xf] %v685
        %782 = vst [vmem:[%s203 + $0xc] sm:$0xf] %v686
        %783 = vst [vmem:[%s203 + $0x10] sm:$0xf] %v687
        %784 = vst [vmem:[%s203 + $0x14] sm:$0xf] %v688
        %785 = vst [vmem:[%s203 + $0x18] sm:$0xf] %v689
        %786 = vst [vmem:[%s203 + $0x1c] sm:$0xf] %v690
        %787 = vst [vmem:[%s203 + $0x20] sm:$0xf] %v691
        %788 = vst [vmem:[%s203 + $0x24] sm:$0xf] %v692
        %789 = vst [vmem:[%s203 + $0x28] sm:$0xf] %v693
        %790 = vst [vmem:[%s203 + $0x2c] sm:$0xf] %v694
        %791 = vst [vmem:[%s203 + $0x30] sm:$0xf] %v695
        %792 = vst [vmem:[%s203 + $0x34] sm:$0xf] %v696
        %793 = vst [vmem:[%s203 + $0x38] sm:$0xf] %v697
        %794 = vst [vmem:[%s203 + $0x3c] sm:$0xf] %v698
        %795 = vst [vmem:[%s203 + $0x40] sm:$0xf] %v699
        %796 = vst [vmem:[%s203 + $0x44] sm:$0xf] %v700
        %797 = vst [vmem:[%s203 + $0x48] sm:$0xf] %v701
        %798 = vst [vmem:[%s203 + $0x4c] sm:$0xf] %v702
        %799 = vst [vmem:[%s203 + $0x50] sm:$0xf] %v703
        %800 = vst [vmem:[%s203 + $0x54] sm:$0xf] %v704
        %801 = vst [vmem:[%s203 + $0x58] sm:$0xf] %v705
        %802 = vst [vmem:[%s203 + $0x5c] sm:$0xf] %v706
        %803 = vst [vmem:[%s203 + $0x60] sm:$0xf] %v707
        %804 = vst [vmem:[%s203 + $0x64] sm:$0xf] %v708
        %805 = vst [vmem:[%s203 + $0x68] sm:$0xf] %v709
        %806 = vst [vmem:[%s203 + $0x6c] sm:$0xf] %v710
        %807 = vst [vmem:[%s203 + $0x70] sm:$0xf] %v711
        %808 = vst [vmem:[%s203 + $0x74] sm:$0xf] %v712
        %809 = vst [vmem:[%s203 + $0x78] sm:$0xf] %v713
        %810 = vst [vmem:[%s203 + $0x7c] sm:$0xf] %v714
        %811 = vst [vmem:[%s203 + $0x80] sm:$0xf] %v715
        %812 = vst [vmem:[%s203 + $0x84] sm:$0xf] %v716
        %813 = vst [vmem:[%s203 + $0x88] sm:$0xf] %v717
        %814 = vst [vmem:[%s203 + $0x8c] sm:$0xf] %v718
        %815 = vst [vmem:[%s203 + $0x90] sm:$0xf] %v719
        %816 = vst [vmem:[%s203 + $0x94] sm:$0xf] %v720
        %817 = vst [vmem:[%s203 + $0x98] sm:$0xf] %v721
        %818 = vst [vmem:[%s203 + $0x9c] sm:$0xf] %v722
        %819 = vst [vmem:[%s203 + $0xa0] sm:$0xf] %v723
        %820 = vst [vmem:[%s203 + $0xa4] sm:$0xf] %v724
        %821 = vst [vmem:[%s203 + $0xa8] sm:$0xf] %v725
        %822 = vst [vmem:[%s203 + $0xac] sm:$0xf] %v726
        %823 = vst [vmem:[%s203 + $0xb0] sm:$0xf] %v727
        %824 = vst [vmem:[%s203 + $0xb4] sm:$0xf] %v728
        %825 = vst [vmem:[%s203 + $0xb8] sm:$0xf] %v729
        %826 = vst [vmem:[%s203 + $0xbc] sm:$0xf] %v730
        %s827 = sand.u32 %s112, 1
        %s828 = scalar_lea.sflag [#allocation4], %s827
        %s829 = sand.u32 %s112, 1
        %s830 = smul.addr %s829, 192
        %s831 = scalar_lea.vmem [#allocation5], %s830
        // Predicated region
        $region37: #{tpu_custom_call.1} parent=31 // pred_check
          %p832 = pneg %p122
        $region38: #{tpu_custom_call.1} parent=31 // pred_check_branch
          %834 = sbr.rel (%p832) target = $region40
        $region39: #{tpu_custom_call.1} parent=31 // pred_region
          %s836 = ssub.s32 3072, 3072
          %837 = vsyncadd %s828, %s836
          %s838 = smul.addr %s24, 96
          %s839 = sadd.s32 %s25, %s838
          %s840 = smul.addr %s839, 64
          %s841 = scalar_lea.hbm %s3, %s840
          %s842 = sshll.u32 %s831, 4
          %s843 = int_to_ptr.vmem [resolvable:$true] %s842
          %848 = dma.vmem_to_hbm [thread:$0]  %s843, 3072, %s841, %s828, 64, 128, 4
        $region40: #{tpu_custom_call.1} parent=31 // pred_fallthru
          _
      $region32: #{tpu_custom_call.1} parent=5 // pred_fallthru
        _
      %p849 = scmp.le.s32.totalorder 2, %s15
      // Predicated region
      $region41: #{tpu_custom_call.1} parent=5 // pred_check
        %p850 = pneg %p849
      $region42: #{tpu_custom_call.1} parent=5 // pred_check_branch
        %852 = sbr.rel (%p850) target = $region44
      $region43: #{tpu_custom_call.1} parent=5 // pred_region
        %s853 = ssub.s32 %s15, 2
        // Predicated region
        $region45: #{tpu_custom_call.1} parent=43 // pred_check
          %p854 = pneg %p128
        $region46: #{tpu_custom_call.1} parent=43 // pred_check_branch
          %856 = sbr.rel (%p854) target = $region48
        $region47: #{tpu_custom_call.1} parent=43 // pred_region
          %s857 = sand.u32 %s113, 1
          %s858 = scalar_lea.sflag [#allocation4], %s857
          %s859 = sand.u32 %s113, 1
          %s860 = smul.addr %s859, 192
          %s861 = scalar_lea.vmem [#allocation5], %s860
          %862 = dma.done %s858, 3072
        $region48: #{tpu_custom_call.1} parent=43 // pred_fallthru
          _
      $region44: #{tpu_custom_call.1} parent=5 // pred_fallthru
        _
    $region6: #{tpu_custom_call.1} parent=1 // loop_footer
      %s19 = sadd.s32 1, %s15
    $region7: #{tpu_custom_call.1} parent=1 // loop_footer_branch
      %14 = sbr.rel target = $region3
    $region8: #{tpu_custom_call.1} parent=1 // loop_exit
      _
    %863 = vsyncpa [#allocation3], 1
    %s864 = scalar_lea.sflag [#allocation3], 1
    %865 = vsyncpa %s864, 1
    %866 = vsyncpa [#allocation4], 1
    %s867 = scalar_lea.sflag [#allocation4], 1
    %868 = vsyncpa %s867, 1

</llo_original>
